<compile_context>
chip_gen: v7x
topology: tpu7x:2x2x1
jax: 0.10.0
libtpu: 0.0.40
codegen_flags: <defaults>
</compile_context>

<pallas_src>
import functools
import math

import jax
import jax.numpy as jnp
from jax.experimental import pallas as pl
from jax.experimental.pallas import tpu as pltpu

LANE = 128
SUBLANE = 8


def _round_up(x, m):
    return (x + m - 1) // m * m


def _patchify(img_nchw, patch):
    """NCHW image -> (B, P, patch*patch*C) tokens (pure-JAX glue)."""
    x = jnp.transpose(img_nchw, (0, 2, 3, 1))                      # NHWC
    B, Hs, Ws, C = x.shape
    x = x.reshape(B, Hs // patch, patch, Ws // patch, patch, C)
    x = jnp.transpose(x, (0, 1, 3, 2, 4, 5))
    return x.reshape(B, (Hs // patch) * (Ws // patch), patch * patch * C)


# -----------------------------------------------------------------------------
# Fused kernel: DETR-stub features for one (batch, image) tile + fc head
# partial, accumulated over the image axis into a lane-dense output tile.
#
#   patches_ref : (P, Dpad)    bf16   one image's patches for one batch row
#   we_ref      : (Dpad, Hpad) bf16   patch-embedding projection
#   be_ref      : (1, Hpad)    f32
#   q0c_ref     : (Hpad, 1)    f32    learned query #0, as a column (MXU RHS)
#   wfc_ref     : (2, Hpad)    f32    fc weight split per image
#   bfc_ref     : (1, 1)       f32    fc bias (SMEM scalar)
#   out_ref     : (8, 128)     f32    value broadcast over a dense tile
# -----------------------------------------------------------------------------
def fused_value_detr_kernel(patches_ref, we_ref, be_ref, q0c_ref, wfc_ref,
                            bfc_ref, out_ref, *, scale):
    m = pl.program_id(1)                     # image index (reduction axis)

    # Patch embedding: MXU matmul, bf16 inputs, f32 accumulation.
    tokens = jnp.dot(patches_ref[...], we_ref[...],
                     preferred_element_type=jnp.float32) + be_ref[...]  # (P, H)

    # Single-query attention scores via the MXU (tokens @ q0 column).
    scores = jnp.dot(tokens, q0c_ref[...],
                     preferred_element_type=jnp.float32) * scale        # (P, 1)
    scores = scores - jnp.max(scores, axis=0, keepdims=True)
    e = jnp.exp(scores)
    inv = pl.reciprocal(jnp.sum(e, axis=0, keepdims=True), approx=True)
    attn = e * inv                                                       # (P, 1)

    # Attention-weighted pooling -> feature row h (1, H).
    h = jnp.sum(attn * tokens, axis=0, keepdims=True)                    # (1, H)

    # Fused value head: partial = h . w_fc[image]  (select row without branch).
    mf = m.astype(jnp.float32)
    w_row = wfc_ref[0:1, :] * (1.0 - mf) + wfc_ref[1:2, :] * mf          # (1, H)
    partial = jnp.sum(h * w_row, axis=1, keepdims=True)                  # (1, 1)

    @pl.when(m == 0)
    def _():
        out_ref[...] = jnp.full(out_ref.shape, bfc_ref[0, 0], out_ref.dtype)

    out_ref[...] = out_ref[...] + jnp.broadcast_to(partial, out_ref.shape)


# -----------------------------------------------------------------------------
# Wrapper
# -----------------------------------------------------------------------------
def value_detr_forward(image1, image2, params):
    patch = int(params["patch"])
    w_embed = params["w_embed"]          # (Dp, H)
    b_embed = params["b_embed"]          # (1, H)
    query0 = params["query0"]            # (1, H)
    w_fc = params["w_fc"]                # (2H, 1)
    b_fc = params["b_fc"]                # (1, 1)

    Dp, H = w_embed.shape
    B = image1.shape[0]

    p1 = _patchify(image1, patch)        # (B, P, Dp)
    p2 = _patchify(image2, patch)
    P = p1.shape[1]
    assert P % SUBLANE == 0, "token count must be a multiple of 8"

    d_pad = _round_up(Dp, LANE)
    h_pad = _round_up(H, LANE)

    # Both images stacked so one pallas_call keeps the weights VMEM-resident.
    patches = jnp.stack([p1, p2], axis=1)                         # (B,2,P,Dp)
    patches = jnp.pad(patches, ((0, 0), (0, 0), (0, 0), (0, d_pad - Dp)))
    patches = patches.astype(jnp.bfloat16)

    we = jnp.pad(w_embed, ((0, d_pad - Dp), (0, h_pad - H))).astype(jnp.bfloat16)
    be = jnp.pad(b_embed, ((0, 0), (0, h_pad - H))).astype(jnp.float32)
    q0c = jnp.pad(query0, ((0, 0), (0, h_pad - H))).astype(jnp.float32).T  # (Hpad,1)
    wfc2 = jnp.pad(w_fc.reshape(2, H), ((0, 0), (0, h_pad - H))).astype(jnp.float32)
    bfc = b_fc.reshape(1, 1).astype(jnp.float32)

    scale = 1.0 / math.sqrt(H)           # scale uses the logical hidden size

    out_slab = pl.pallas_call(
        functools.partial(fused_value_detr_kernel, scale=float(scale)),
        out_shape=jax.ShapeDtypeStruct((B, SUBLANE, LANE), jnp.float32),
        grid=(B, 2),                     # batch parallel, image axis = reduction
        in_specs=[
            pl.BlockSpec((None, None, P, d_pad), lambda b, m: (b, m, 0, 0)),
            pl.BlockSpec((d_pad, h_pad), lambda b, m: (0, 0)),
            pl.BlockSpec((1, h_pad), lambda b, m: (0, 0)),
            pl.BlockSpec((h_pad, 1), lambda b, m: (0, 0)),
            pl.BlockSpec((2, h_pad), lambda b, m: (0, 0)),
            pl.BlockSpec(memory_space=pltpu.MemorySpace.SMEM),
        ],
        out_specs=pl.BlockSpec((None, SUBLANE, LANE), lambda b, m: (b, 0, 0)),
        compiler_params=pltpu.CompilerParams(
            dimension_semantics=("parallel", "arbitrary")),
    )(patches, we, be, q0c, wfc2, bfc)

    return out_slab[:, 0, 0:1]           # (B, 1)


# -----------------------------------------------------------------------------
# Pure-JAX reference (same bf16 feeding of the embed matmul)
# -----------------------------------------------------------------------------
def value_detr_reference(image1, image2, params):
    patch = int(params["patch"])
    H = params["w_embed"].shape[1]
    we = params["w_embed"].astype(jnp.bfloat16).astype(jnp.float32)

    def feats(img):
        p = _patchify(img, patch).astype(jnp.bfloat16).astype(jnp.float32)
        tok = jnp.einsum("bpd,dh->bph", p, we) + params["b_embed"]
        sc = jnp.einsum("bph,h->bp", tok, params["query0"][0]) / math.sqrt(H)
        sc = sc - sc.max(axis=-1, keepdims=True)
        e = jnp.exp(sc)
        a = e / e.sum(axis=-1, keepdims=True)
        return jnp.einsum("bp,bph->bh", a, tok)

    cat = jnp.concatenate([feats(image1), feats(image2)], axis=1)
    return cat @ params["w_fc"] + params["b_fc"]


# -----------------------------------------------------------------------------
if __name__ == "__main__":
    B, C, S = 2, 3, 16                  # NCHW images like PyTorch
    PATCH = 4
    HIDDEN = 32                         # stand-in for DETR hidden_size (256);
                                        # zero-padded to 128 lanes in-kernel
    patch_dim = PATCH * PATCH * C

    key = jax.random.PRNGKey(0)
    k_img1, k_img2, k_we, k_q0, k_fc = jax.random.split(key, 5)

    image1 = jax.random.normal(k_img1, (B, C, S, S), jnp.float32)
    image2 = jax.random.normal(k_img2, (B, C, S, S), jnp.float32)

    params = {
        "patch": PATCH,
        "w_embed": jax.random.normal(k_we, (patch_dim, HIDDEN), jnp.float32) * 0.02,
        "b_embed": jnp.zeros((1, HIDDEN), jnp.float32),
        "query0":  jax.random.normal(k_q0, (1, HIDDEN), jnp.float32) * 0.02,
        "w_fc":    jax.random.normal(k_fc, (2 * HIDDEN, 1), jnp.float32) * 0.02,
        "b_fc":    jnp.zeros((1, 1), jnp.float32),
    }

    out = value_detr_forward(image1, image2, params)
    out = jax.block_until_ready(out)
    assert out.shape == (B, 1) and out.dtype == jnp.float32

    ref = jax.block_until_ready(value_detr_reference(image1, image2, params))
    assert jnp.allclose(out, ref, atol=5e-3, rtol=5e-2), (out, ref)

    print("KERNEL_OK")
</pallas_src>

<mosaic_0001>
module attributes {stable_mosaic.version = 11 : i64} {
  func.func @fused_value_detr_kernel(%arg0: i32, %arg1: i32, %arg2: memref<1x1x16x128xbf16, #tpu.memory_space<vmem>>, %arg3: memref<128x128xbf16, #tpu.memory_space<vmem>>, %arg4: memref<1x128xf32, #tpu.memory_space<vmem>>, %arg5: memref<128x1xf32, #tpu.memory_space<vmem>>, %arg6: memref<2x128xf32, #tpu.memory_space<vmem>>, %arg7: memref<1x1xf32, #tpu.memory_space<smem>>, %arg8: memref<1x8x128xf32, #tpu.memory_space<vmem>>) attributes {dimension_semantics = [#tpu.dimension_semantics<parallel>, #tpu.dimension_semantics<arbitrary>], iteration_bounds = array<i64: 2, 2>, scalar_prefetch = 0 : i64, scratch_operands = 0 : i64, tpu.core_type = #tpu.core_type<tc>, window_params = [{transform_indices = @transform_0, window_bounds = array<i64: 1, 1, 16, 128>}, {pipeline_mode = #tpu.pipeline_mode<synchronous>, transform_indices = @transform_1, window_bounds = array<i64: 128, 128>}, {pipeline_mode = #tpu.pipeline_mode<synchronous>, transform_indices = @transform_2, window_bounds = array<i64: 1, 128>}, {pipeline_mode = #tpu.pipeline_mode<synchronous>, transform_indices = @transform_3, window_bounds = array<i64: 128, 1>}, {pipeline_mode = #tpu.pipeline_mode<synchronous>, transform_indices = @transform_4, window_bounds = array<i64: 2, 128>}, {transform_indices = @transform_5, window_bounds = array<i64: 1, 1>}, {transform_indices = @transform_6, window_bounds = array<i64: 1, 8, 128>}]} {
    %c0 = arith.constant 0 : index
    %c0_0 = arith.constant 0 : index
    %c0_1 = arith.constant 0 : index
    %c0_2 = arith.constant 0 : index
    %0 = vector.load %arg2[%c0, %c0_0, %c0_1, %c0_2] : memref<1x1x16x128xbf16, #tpu.memory_space<vmem>>, vector<1x1x16x128xbf16>
    %1 = vector.shape_cast %0 : vector<1x1x16x128xbf16> to vector<16x128xbf16>
    %c0_3 = arith.constant 0 : index
    %c0_4 = arith.constant 0 : index
    %2 = vector.load %arg3[%c0_3, %c0_4] : memref<128x128xbf16, #tpu.memory_space<vmem>>, vector<128x128xbf16>
    %cst = arith.constant dense<0.000000e+00> : vector<16x128xf32>
    %3 = tpu.matmul %1, %2, %cst {dimension_numbers = #tpu.dot_dimension_numbers<[1], [0], [0], [1], [0, 0, 1, 1], [], []>} : vector<16x128xbf16>, vector<128x128xbf16>, vector<16x128xf32> -> vector<16x128xf32>
    %c0_5 = arith.constant 0 : index
    %c0_6 = arith.constant 0 : index
    %4 = vector.load %arg4[%c0_5, %c0_6] : memref<1x128xf32, #tpu.memory_space<vmem>>, vector<1x128xf32>
    %5 = vector.broadcast %4 : vector<1x128xf32> to vector<16x128xf32>
    %6 = arith.addf %3, %5 : vector<16x128xf32>
    %c0_7 = arith.constant 0 : index
    %c0_8 = arith.constant 0 : index
    %7 = vector.load %arg5[%c0_7, %c0_8] : memref<128x1xf32, #tpu.memory_space<vmem>>, vector<128x1xf32>
    %cst_9 = arith.constant dense<0.000000e+00> : vector<16x1xf32>
    %8 = tpu.matmul %6, %7, %cst_9 {dimension_numbers = #tpu.dot_dimension_numbers<[1], [0], [0], [1], [0, 0, 1, 1], [], []>} : vector<16x128xf32>, vector<128x1xf32>, vector<16x1xf32> -> vector<16x1xf32>
    %cst_10 = arith.constant 0.176776692 : f32
    %9 = vector.broadcast %cst_10 : f32 to vector<16x1xf32>
    %10 = arith.mulf %8, %9 : vector<16x1xf32>
    %cst_11 = arith.constant dense<0xFF800000> : vector<1xf32>
    %11 = vector.multi_reduction <maximumf>, %10, %cst_11 [0] : vector<16x1xf32> to vector<1xf32>
    %12 = vector.shape_cast %11 : vector<1xf32> to vector<1x1xf32>
    %13 = vector.broadcast %12 : vector<1x1xf32> to vector<16x1xf32>
    %14 = arith.subf %10, %13 : vector<16x1xf32>
    %15 = math.exp %14 : vector<16x1xf32>
    %cst_12 = arith.constant dense<0.000000e+00> : vector<1xf32>
    %16 = vector.multi_reduction <add>, %15, %cst_12 [0] : vector<16x1xf32> to vector<1xf32>
    %17 = vector.shape_cast %16 : vector<1xf32> to vector<1x1xf32>
    %18 = tpu.reciprocal %17 {approx = true} : vector<1x1xf32> -> vector<1x1xf32>
    %19 = vector.broadcast %18 : vector<1x1xf32> to vector<16x1xf32>
    %20 = arith.mulf %15, %19 : vector<16x1xf32>
    %21 = vector.broadcast %20 : vector<16x1xf32> to vector<16x128xf32>
    %22 = arith.mulf %21, %6 : vector<16x128xf32>
    %cst_13 = arith.constant dense<0.000000e+00> : vector<128xf32>
    %23 = vector.multi_reduction <add>, %22, %cst_13 [0] : vector<16x128xf32> to vector<128xf32>
    %24 = vector.shape_cast %23 : vector<128xf32> to vector<1x128xf32>
    %25 = arith.sitofp %arg1 : i32 to f32
    %c0_14 = arith.constant 0 : index
    %c0_15 = arith.constant 0 : index
    %26 = vector.load %arg6[%c0_14, %c0_15] : memref<2x128xf32, #tpu.memory_space<vmem>>, vector<1x128xf32>
    %cst_16 = arith.constant 1.000000e+00 : f32
    %27 = arith.subf %cst_16, %25 : f32
    %28 = vector.broadcast %27 : f32 to vector<1x128xf32>
    %29 = arith.mulf %26, %28 : vector<1x128xf32>
    %c1 = arith.constant 1 : index
    %c0_17 = arith.constant 0 : index
    %30 = vector.load %arg6[%c1, %c0_17] : memref<2x128xf32, #tpu.memory_space<vmem>>, vector<1x128xf32>
    %31 = vector.broadcast %25 : f32 to vector<1x128xf32>
    %32 = arith.mulf %30, %31 : vector<1x128xf32>
    %33 = arith.addf %29, %32 : vector<1x128xf32>
    %34 = arith.mulf %24, %33 : vector<1x128xf32>
    %cst_18 = arith.constant dense<0.000000e+00> : vector<1xf32>
    %35 = vector.multi_reduction <add>, %34, %cst_18 [1] : vector<1x128xf32> to vector<1xf32>
    %36 = vector.shape_cast %35 : vector<1xf32> to vector<1x1xf32>
    %c0_i32 = arith.constant 0 : i32
    %37 = arith.cmpi eq, %arg1, %c0_i32 : i32
    %38 = arith.extui %37 : i1 to i32
    %c0_i32_19 = arith.constant 0 : i32
    %39 = arith.cmpi ne, %38, %c0_i32_19 : i32
    scf.if %39 {
      %c0_26 = arith.constant 0 : index
      %c0_27 = arith.constant 0 : index
      %48 = memref.load %arg7[%c0_26, %c0_27] : memref<1x1xf32, #tpu.memory_space<smem>>
      %49 = vector.broadcast %48 : f32 to vector<8x128xf32>
      %c0_28 = arith.constant 0 : index
      %c0_29 = arith.constant 0 : index
      %c0_30 = arith.constant 0 : index
      %50 = vector.load %arg8[%c0_28, %c0_29, %c0_30] : memref<1x8x128xf32, #tpu.memory_space<vmem>>, vector<1x8x128xf32>
      %51 = vector.shape_cast %50 : vector<1x8x128xf32> to vector<8x128xf32>
      %52 = vector.shape_cast %49 : vector<8x128xf32> to vector<1x8x128xf32>
      tpu.vector_store %arg8[%c0_28, %c0_29, %c0_30], %52 {strides = array<i32>} : memref<1x8x128xf32, #tpu.memory_space<vmem>>, vector<1x8x128xf32>,
    } else {
    }
    %c0_20 = arith.constant 0 : index
    %c0_21 = arith.constant 0 : index
    %c0_22 = arith.constant 0 : index
    %40 = vector.load %arg8[%c0_20, %c0_21, %c0_22] : memref<1x8x128xf32, #tpu.memory_space<vmem>>, vector<1x8x128xf32>
    %41 = vector.shape_cast %40 : vector<1x8x128xf32> to vector<8x128xf32>
    %42 = vector.shape_cast %36 : vector<1x1xf32> to vector<1x1xf32>
    %43 = vector.broadcast %42 : vector<1x1xf32> to vector<8x128xf32>
    %44 = arith.addf %41, %43 : vector<8x128xf32>
    %c0_23 = arith.constant 0 : index
    %c0_24 = arith.constant 0 : index
    %c0_25 = arith.constant 0 : index
    %45 = vector.load %arg8[%c0_23, %c0_24, %c0_25] : memref<1x8x128xf32, #tpu.memory_space<vmem>>, vector<1x8x128xf32>
    %46 = vector.shape_cast %45 : vector<1x8x128xf32> to vector<8x128xf32>
    %47 = vector.shape_cast %44 : vector<8x128xf32> to vector<1x8x128xf32>
    tpu.vector_store %arg8[%c0_23, %c0_24, %c0_25], %47 {strides = array<i32>} : memref<1x8x128xf32, #tpu.memory_space<vmem>>, vector<1x8x128xf32>,
    return
  }
  func.func @transform_0(%arg0: i32, %arg1: i32) -> (i32, i32, i32, i32) {
    %c0_i32 = arith.constant 0 : i32
    %c0_i32_0 = arith.constant 0 : i32
    %c0_i32_1 = arith.constant 0 : i32
    return %arg0, %arg1, %c0_i32, %c0_i32_0 : i32, i32, i32, i32
  }
  func.func @transform_1(%arg0: i32, %arg1: i32) -> (i32, i32) {
    %c0_i32 = arith.constant 0 : i32
    %c0_i32_0 = arith.constant 0 : i32
    %c0_i32_1 = arith.constant 0 : i32
    return %c0_i32, %c0_i32_0 : i32, i32
  }
  func.func @transform_2(%arg0: i32, %arg1: i32) -> (i32, i32) {
    %c0_i32 = arith.constant 0 : i32
    %c0_i32_0 = arith.constant 0 : i32
    %c0_i32_1 = arith.constant 0 : i32
    return %c0_i32, %c0_i32_0 : i32, i32
  }
  func.func @transform_3(%arg0: i32, %arg1: i32) -> (i32, i32) {
    %c0_i32 = arith.constant 0 : i32
    %c0_i32_0 = arith.constant 0 : i32
    %c0_i32_1 = arith.constant 0 : i32
    return %c0_i32, %c0_i32_0 : i32, i32
  }
  func.func @transform_4(%arg0: i32, %arg1: i32) -> (i32, i32) {
    %c0_i32 = arith.constant 0 : i32
    %c0_i32_0 = arith.constant 0 : i32
    %c0_i32_1 = arith.constant 0 : i32
    return %c0_i32, %c0_i32_0 : i32, i32
  }
  func.func @transform_5(%arg0: i32, %arg1: i32) -> (i32, i32) {
    %c0_i32 = arith.constant 0 : i32
    %c0_i32_0 = arith.constant 0 : i32
    %c0_i32_1 = arith.constant 0 : i32
    return %c0_i32, %c0_i32_0 : i32, i32
  }
  func.func @transform_6(%arg0: i32, %arg1: i32) -> (i32, i32, i32) {
    %c0_i32 = arith.constant 0 : i32
    %c0_i32_0 = arith.constant 0 : i32
    %c0_i32_1 = arith.constant 0 : i32
    return %arg0, %c0_i32, %c0_i32_0 : i32, i32, i32
  }
}

</mosaic_0001>

<llo_original>
// kernel: tpu_custom_call.1
$region0: #{tpu_custom_call.1}
  #allocation0 [shape = 'u32[]', space=smem, size = 0x4, offset = 0x4, fixed_abs, tag = 'smem constant byte address 0x4 - core index']
  #allocation1 [shape = 'u32[144,128]{1,0:T(1,128)}', space=vmem, size = 0x12000, scoped, tag = 'internal scratch']
  #allocation2 [shape = 'f32[1,1]{1,0:T(1,128)S(6)}', space=smem, size = 0x200, scoped, tag = 'scoped memory for tpu_custom_call.1']
  %s0 = inlined_call_operand.vmem [shape: bf16[2,2,16,128], index: 0, kind: input, shape index: {}]
  %s1 = inlined_call_operand.vmem [shape: bf16[128,128], index: 1, kind: input, shape index: {}]
  %s2 = inlined_call_operand.vmem [shape: f32[1,128], index: 2, kind: input, shape index: {}]
  %s3 = inlined_call_operand.vmem [shape: f32[128,1], index: 3, kind: input, shape index: {}]
  %s4 = inlined_call_operand.vmem [shape: f32[2,128], index: 4, kind: input, shape index: {}]
  %s5 = inlined_call_operand.<no memory space> [shape: f32[1,1], index: 5, kind: input, shape index: {}]
  %s6 = inlined_call_operand.hbm [shape: f32[2,8,128], index: 6, kind: output, shape index: {}]
  %s7 = sld [smem:[#allocation0]]
  $region61: #{tpu_custom_call.1} parent=0
    _
  %s9 = ssub.s32 1, %s7
  %s10 = scalar_select 0, %s9, %s7
  %11 = sst [smem:[#allocation2]] %s5
  $region1: #{tpu_custom_call.1} parent=0
    #allocation3 [shape = 'u8[8192]{0}', space=vmem, size = 0x2000, scoped, tag = 'output window, operand 0']
    #allocation4 [shape = 's32[2]{0}', space=sflag, size = 0x8, scoped, tag = 'scoped memory for tpu_custom_call.1']
    %12 = vsyncpa [#allocation4], 0
    %s13 = scalar_lea.sflag [#allocation4], 1
    %14 = vsyncpa %s13, 0
    loop: start=0, step=1, limit=6
    $region2: #{tpu_custom_call.1} parent=1 // loop_pre_header
      _
    $region3: #{tpu_custom_call.1} parent=1 // loop_header
      %s16 = sphi 0, %s20
      %p17 = scmp.ge.s32.totalorder %s16, 6
      %s23 = sphi 0, %s35
      %s24 = sphi 0, %s31
      %s25 = sphi 0, %s23
      %s26 = sphi 0, %s24
      %s27 = sphi 0, %s25
      %s28 = sphi 0, %s26
      %s40 = sphi 0, %s42
      %s43 = sphi 0, %s40
      %s44 = sphi 0, %s43
      %s60 = sphi 0, %s44
      %s64 = sphi 0, %s64
      %s66 = sphi 0, %s64
      %s67 = sphi 0, %s66
      %s81 = sphi 0, %s67
      %s85 = sphi 0, %s85
      %s87 = sphi 0, %s85
      %s88 = sphi 0, %s87
      %s102 = sphi 0, %s88
      %s106 = sphi 0, %s106
      %s108 = sphi 0, %s106
      %s109 = sphi 0, %s108
      %s123 = sphi 0, %s109
      %s127 = sphi 0, %s127
      %s129 = sphi 0, %s127
      %s130 = sphi 0, %s129
      %s144 = sphi 0, %s130
      %s148 = sphi 0, %s148
      %s150 = sphi 0, %s148
      %s151 = sphi 0, %s150
      %s165 = sphi 0, %s151
      %s171 = sphi 0, %s173
      %s174 = sphi 0, %s171
      %s175 = sphi 0, %s174
      %s191 = sphi 0, %s175
    $region4: #{tpu_custom_call.1} parent=1 // loop_header_branch
      %19 = sbr.rel (%p17) target = $region8
    $region5: #{tpu_custom_call.1} parent=1 // loop_body
      %s21 = ssub.s32 %s16, 1
      %s22 = ssub.s32 %s16, 2
      %s29 = sadd.s32 1, %s24
      %p30 = scmp.ge.s32.totalorder %s29, 2
      %s31 = scalar_select %p30, 0, %s29
      %s32 = sadd.s32 1, %s23
      %s33 = scalar_select %p30, %s32, %s23
      %p34 = scmp.ge.s32.totalorder %s33, 2
      %s35 = scalar_select %p34, 0, %s33
      %s36 = ssub.s32 %s23, %s35
      %s37 = ssub.s32 %s24, %s31
      %s38 = sor.u32 %s36, %s37
      %p39 = scmp.eq.s32.totalorder %s38, 0
      %s41 = sadd.s32 %s40, 1
      %s42 = scalar_select %p39, %s40, %s41
      %p45 = pneg %p39
      %p46 = scmp.eq.s32.totalorder %s16, 3
      %p47 = por %p45, %p46
      %p48 = scmp.ne.s32.totalorder %s40, %s43
      %p49 = scmp.eq.s32.totalorder %s16, 0
      %p50 = por %p48, %p49
      %p51 = scmp.ne.s32.totalorder %s40, %s43
      %p52 = scmp.eq.s32.totalorder %s21, 3
      %p53 = por %p51, %p52
      %p54 = scmp.ne.s32.totalorder %s43, %s44
      %p55 = scmp.eq.s32.totalorder %s21, 0
      %p56 = por %p54, %p55
      %p57 = scmp.ne.s32.totalorder %s43, %s44
      %p58 = scmp.eq.s32.totalorder %s22, 3
      %p59 = por %p57, %p58
      %p61 = scmp.ne.s32.totalorder %s44, %s60
      %p62 = scmp.eq.s32.totalorder %s22, 0
      %p63 = por %p61, %p62
      %s65 = sadd.s32 %s64, 1
      %p68 = scmp.eq.s32.totalorder %s16, 3
      %p69 = scmp.ne.s32.totalorder %s64, %s66
      %p70 = scmp.eq.s32.totalorder %s16, 0
      %p71 = por %p69, %p70
      %p72 = scmp.ne.s32.totalorder %s64, %s66
      %p73 = scmp.eq.s32.totalorder %s21, 3
      %p74 = por %p72, %p73
      %p75 = scmp.ne.s32.totalorder %s66, %s67
      %p76 = scmp.eq.s32.totalorder %s21, 0
      %p77 = por %p75, %p76
      %p78 = scmp.ne.s32.totalorder %s66, %s67
      %p79 = scmp.eq.s32.totalorder %s22, 3
      %p80 = por %p78, %p79
      %p82 = scmp.ne.s32.totalorder %s67, %s81
      %p83 = scmp.eq.s32.totalorder %s22, 0
      %p84 = por %p82, %p83
      %s86 = sadd.s32 %s85, 1
      %p89 = scmp.eq.s32.totalorder %s16, 3
      %p90 = scmp.ne.s32.totalorder %s85, %s87
      %p91 = scmp.eq.s32.totalorder %s16, 0
      %p92 = por %p90, %p91
      %p93 = scmp.ne.s32.totalorder %s85, %s87
      %p94 = scmp.eq.s32.totalorder %s21, 3
      %p95 = por %p93, %p94
      %p96 = scmp.ne.s32.totalorder %s87, %s88
      %p97 = scmp.eq.s32.totalorder %s21, 0
      %p98 = por %p96, %p97
      %p99 = scmp.ne.s32.totalorder %s87, %s88
      %p100 = scmp.eq.s32.totalorder %s22, 3
      %p101 = por %p99, %p100
      %p103 = scmp.ne.s32.totalorder %s88, %s102
      %p104 = scmp.eq.s32.totalorder %s22, 0
      %p105 = por %p103, %p104
      %s107 = sadd.s32 %s106, 1
      %p110 = scmp.eq.s32.totalorder %s16, 3
      %p111 = scmp.ne.s32.totalorder %s106, %s108
      %p112 = scmp.eq.s32.totalorder %s16, 0
      %p113 = por %p111, %p112
      %p114 = scmp.ne.s32.totalorder %s106, %s108
      %p115 = scmp.eq.s32.totalorder %s21, 3
      %p116 = por %p114, %p115
      %p117 = scmp.ne.s32.totalorder %s108, %s109
      %p118 = scmp.eq.s32.totalorder %s21, 0
      %p119 = por %p117, %p118
      %p120 = scmp.ne.s32.totalorder %s108, %s109
      %p121 = scmp.eq.s32.totalorder %s22, 3
      %p122 = por %p120, %p121
      %p124 = scmp.ne.s32.totalorder %s109, %s123
      %p125 = scmp.eq.s32.totalorder %s22, 0
      %p126 = por %p124, %p125
      %s128 = sadd.s32 %s127, 1
      %p131 = scmp.eq.s32.totalorder %s16, 3
      %p132 = scmp.ne.s32.totalorder %s127, %s129
      %p133 = scmp.eq.s32.totalorder %s16, 0
      %p134 = por %p132, %p133
      %p135 = scmp.ne.s32.totalorder %s127, %s129
      %p136 = scmp.eq.s32.totalorder %s21, 3
      %p137 = por %p135, %p136
      %p138 = scmp.ne.s32.totalorder %s129, %s130
      %p139 = scmp.eq.s32.totalorder %s21, 0
      %p140 = por %p138, %p139
      %p141 = scmp.ne.s32.totalorder %s129, %s130
      %p142 = scmp.eq.s32.totalorder %s22, 3
      %p143 = por %p141, %p142
      %p145 = scmp.ne.s32.totalorder %s130, %s144
      %p146 = scmp.eq.s32.totalorder %s22, 0
      %p147 = por %p145, %p146
      %s149 = sadd.s32 %s148, 1
      %p152 = scmp.eq.s32.totalorder %s16, 3
      %p153 = scmp.ne.s32.totalorder %s148, %s150
      %p154 = scmp.eq.s32.totalorder %s16, 0
      %p155 = por %p153, %p154
      %p156 = scmp.ne.s32.totalorder %s148, %s150
      %p157 = scmp.eq.s32.totalorder %s21, 3
      %p158 = por %p156, %p157
      %p159 = scmp.ne.s32.totalorder %s150, %s151
      %p160 = scmp.eq.s32.totalorder %s21, 0
      %p161 = por %p159, %p160
      %p162 = scmp.ne.s32.totalorder %s150, %s151
      %p163 = scmp.eq.s32.totalorder %s22, 3
      %p164 = por %p162, %p163
      %p166 = scmp.ne.s32.totalorder %s151, %s165
      %p167 = scmp.eq.s32.totalorder %s22, 0
      %p168 = por %p166, %p167
      %s169 = ssub.s32 %s23, %s35
      %p170 = scmp.eq.s32.totalorder %s169, 0
      %s172 = sadd.s32 %s171, 1
      %s173 = scalar_select %p170, %s171, %s172
      %p176 = pneg %p170
      %p177 = scmp.eq.s32.totalorder %s16, 3
      %p178 = por %p176, %p177
      %p179 = scmp.ne.s32.totalorder %s171, %s174
      %p180 = scmp.eq.s32.totalorder %s16, 0
      %p181 = por %p179, %p180
      %p182 = scmp.ne.s32.totalorder %s171, %s174
      %p183 = scmp.eq.s32.totalorder %s21, 3
      %p184 = por %p182, %p183
      %p185 = scmp.ne.s32.totalorder %s174, %s175
      %p186 = scmp.eq.s32.totalorder %s21, 0
      %p187 = por %p185, %p186
      %p188 = scmp.ne.s32.totalorder %s174, %s175
      %p189 = scmp.eq.s32.totalorder %s22, 3
      %p190 = por %p188, %p189
      %p192 = scmp.ne.s32.totalorder %s175, %s191
      %p193 = scmp.eq.s32.totalorder %s22, 0
      %p194 = por %p192, %p193
      %p195 = scmp.le.s32.totalorder 1, %s16
      %p196 = scmp.lt.s32.totalorder %s16, 5
      %p197 = pnand %p195, %p196
      %p198 = pneg %p197
      // Predicated region
      $region9: #{tpu_custom_call.1} parent=5 // pred_check
        _
      $region10: #{tpu_custom_call.1} parent=5 // pred_check_branch
        %200 = sbr.rel (%p197) target = $region12
      $region11: #{tpu_custom_call.1} parent=5 // pred_region
        %s201 = ssub.s32 %s16, 1
        // Predicated region
        $region13: #{tpu_custom_call.1} parent=11 // pred_check
          %p202 = pneg %p77
        $region14: #{tpu_custom_call.1} parent=11 // pred_check_branch
          %204 = sbr.rel (%p202) target = $region16
        $region15: #{tpu_custom_call.1} parent=11 // pred_region
          _
        $region16: #{tpu_custom_call.1} parent=11 // pred_fallthru
          _
        // Predicated region
        $region17: #{tpu_custom_call.1} parent=11 // pred_check
          %p205 = pneg %p98
        $region18: #{tpu_custom_call.1} parent=11 // pred_check_branch
          %207 = sbr.rel (%p205) target = $region20
        $region19: #{tpu_custom_call.1} parent=11 // pred_region
          _
        $region20: #{tpu_custom_call.1} parent=11 // pred_fallthru
          _
        // Predicated region
        $region21: #{tpu_custom_call.1} parent=11 // pred_check
          %p208 = pneg %p119
        $region22: #{tpu_custom_call.1} parent=11 // pred_check_branch
          %210 = sbr.rel (%p208) target = $region24
        $region23: #{tpu_custom_call.1} parent=11 // pred_region
          _
        $region24: #{tpu_custom_call.1} parent=11 // pred_fallthru
          _
        // Predicated region
        $region25: #{tpu_custom_call.1} parent=11 // pred_check
          %p211 = pneg %p140
        $region26: #{tpu_custom_call.1} parent=11 // pred_check_branch
          %213 = sbr.rel (%p211) target = $region28
        $region27: #{tpu_custom_call.1} parent=11 // pred_region
          _
        $region28: #{tpu_custom_call.1} parent=11 // pred_fallthru
          _
        // Predicated region
        $region29: #{tpu_custom_call.1} parent=11 // pred_check
          %p214 = pneg %p161
        $region30: #{tpu_custom_call.1} parent=11 // pred_check_branch
          %216 = sbr.rel (%p214) target = $region32
        $region31: #{tpu_custom_call.1} parent=11 // pred_region
          _
        $region32: #{tpu_custom_call.1} parent=11 // pred_fallthru
          _
      $region12: #{tpu_custom_call.1} parent=5 // pred_fallthru
        _
      %p217 = scmp.lt.s32.totalorder %s16, 4
      // Predicated region
      $region33: #{tpu_custom_call.1} parent=5 // pred_check
        %p218 = pneg %p217
      $region34: #{tpu_custom_call.1} parent=5 // pred_check_branch
        %220 = sbr.rel (%p218) target = $region36
      $region35: #{tpu_custom_call.1} parent=5 // pred_region
        // Predicated region
        $region37: #{tpu_custom_call.1} parent=35 // pred_check
          %p221 = pneg %p50
        $region38: #{tpu_custom_call.1} parent=35 // pred_check_branch
          %223 = sbr.rel (%p221) target = $region40
        $region39: #{tpu_custom_call.1} parent=35 // pred_region
          %p224 = scmp.lt.s32.totalorder %s23, 1
          %s225 = scalar_select %p224, %s23, 1
          %p226 = scmp.lt.s32.totalorder %s24, 1
          %s227 = scalar_select %p226, %s24, 1
          %s228 = smul.addr %s227, 2
          %s229 = smul.addr %s225, 4
          %s230 = sadd.s32 %s228, %s229
          %s231 = smul.addr %s230, 4
          %s232 = scalar_lea.vmem %s0, %s231
        $region40: #{tpu_custom_call.1} parent=35 // pred_fallthru
          _
      $region36: #{tpu_custom_call.1} parent=5 // pred_fallthru
        _
      %p233 = scmp.le.s32.totalorder 1, %s16
      %p234 = scmp.lt.s32.totalorder %s16, 5
      %p235 = pnand %p233, %p234
      %p236 = pneg %p235
      // Predicated region
      $region41: #{tpu_custom_call.1} parent=5 // pred_check
        _
      $region42: #{tpu_custom_call.1} parent=5 // pred_check_branch
        %238 = sbr.rel (%p235) target = $region44
      $region43: #{tpu_custom_call.1} parent=5 // pred_region
        %s239 = ssub.s32 %s16, 1
        %p240 = scmp.lt.s32.totalorder %s25, 1
        %s241 = scalar_select %p240, %s25, 1
        %p242 = scmp.lt.s32.totalorder %s26, 1
        %s243 = scalar_select %p242, %s26, 1
        %s244 = smul.addr %s243, 2
        %s245 = smul.addr %s241, 4
        %s246 = sadd.s32 %s244, %s245
        %s247 = smul.addr %s246, 4
        %s248 = scalar_lea.vmem %s0, %s247
        %p249 = pneg %p56
        %p250 = pneg %p53
        %p251 = pneg %p77
        %p252 = pneg %p74
        %p253 = pneg %p98
        %p254 = pneg %p95
        %p255 = pneg %p119
        %p256 = pneg %p116
        %p257 = pneg %p140
        %p258 = pneg %p137
        %p259 = pneg %p161
        %p260 = pneg %p158
        %p261 = pneg %p187
        %p262 = pneg %p184
        %s263 = sand.u32 %s174, 1
        %s264 = scalar_lea.sflag [#allocation4], %s263
        %s265 = sand.u32 %s174, 1
        %s266 = smul.addr %s265, 8
        %s267 = scalar_lea.vmem [#allocation3], %s266
        %p268 = scmp.lt.s32.totalorder %s25, 1
        %s269 = scalar_select %p268, %s25, 1
        %p270 = scmp.lt.s32.totalorder %s26, 1
        %s271 = scalar_select %p270, %s26, 1
        %s272 = smul.addr %s271, 2
        %s273 = smul.addr %s269, 4
        %s274 = sadd.s32 %s272, %s273
        %s275 = smul.addr %s274, 4
        %s276 = scalar_lea.vmem %s0, %s275
        %v278 = vld [vmem:[%s276] sm:$0xf]
        %v279 = vld [vmem:[%s276 + $0x4] sm:$0xf]
        %v280 = vld [vmem:[%s1] sm:$0xf]
        %v281 = vld [vmem:[%s1 + $0x4] sm:$0xf]
        %v282 = vld [vmem:[%s1 + $0x8] sm:$0xf]
        %v283 = vld [vmem:[%s1 + $0xc] sm:$0xf]
        %v284 = vld [vmem:[%s1 + $0x10] sm:$0xf]
        %v285 = vld [vmem:[%s1 + $0x14] sm:$0xf]
        %v286 = vld [vmem:[%s1 + $0x18] sm:$0xf]
        %v287 = vld [vmem:[%s1 + $0x1c] sm:$0xf]
        %v288 = vld [vmem:[%s1 + $0x20] sm:$0xf]
        %v289 = vld [vmem:[%s1 + $0x24] sm:$0xf]
        %v290 = vld [vmem:[%s1 + $0x28] sm:$0xf]
        %v291 = vld [vmem:[%s1 + $0x2c] sm:$0xf]
        %v292 = vld [vmem:[%s1 + $0x30] sm:$0xf]
        %v293 = vld [vmem:[%s1 + $0x34] sm:$0xf]
        %v294 = vld [vmem:[%s1 + $0x38] sm:$0xf]
        %v295 = vld [vmem:[%s1 + $0x3c] sm:$0xf]
        %v296 = vld [vmem:[%s2] sm:$0x1]
        %v298 = vlaneseq
        %v299 = vshrl.u32 %v298, 7
        %v300 = vsub.s32 0, %v299
        %v301 = vrot.slane %v296, %v300
        %v305 = vunpack.c.l.b16 %v278
        %v306 = vunpack.c.l.b16 %v279
        %v307 = vpack.c.b16 %v306, %v305
        %v325 = vunpack.c.l.b16 %v280
        %v326 = vunpack.c.l.b16 %v281
        %v327 = vunpack.c.l.b16 %v282
        %v328 = vunpack.c.l.b16 %v283
        %v329 = vunpack.c.l.b16 %v284
        %v330 = vunpack.c.l.b16 %v285
        %v331 = vunpack.c.l.b16 %v286
        %v332 = vunpack.c.l.b16 %v287
        %v333 = vunpack.c.l.b16 %v288
        %v334 = vunpack.c.l.b16 %v289
        %v335 = vunpack.c.l.b16 %v290
        %v336 = vunpack.c.l.b16 %v291
        %v337 = vunpack.c.l.b16 %v292
        %v338 = vunpack.c.l.b16 %v293
        %v339 = vunpack.c.l.b16 %v294
        %v340 = vunpack.c.l.b16 %v295
        %v341 = vpack.c.b16 %v326, %v325
        %v342 = vpack.c.b16 %v328, %v327
        %v343 = vpack.c.b16 %v330, %v329
        %v344 = vpack.c.b16 %v332, %v331
        %v345 = vpack.c.b16 %v334, %v333
        %v346 = vpack.c.b16 %v336, %v335
        %v347 = vpack.c.b16 %v338, %v337
        %v348 = vpack.c.b16 %v340, %v339
        %357 = vmatprep.subr.bf16.mxu0 0
        %358 = vmatpush1.bf16.msra.mxu0 %v341
        %359 = vmatprep.subr.bf16.mxu0 0
        %360 = vmatpush1.bf16.msra.mxu0 %v342
        %361 = vmatprep.subr.bf16.mxu0 0
        %362 = vmatpush1.bf16.msra.mxu0 %v343
        %363 = vmatprep.subr.bf16.mxu0 0
        %364 = vmatpush1.bf16.msra.mxu0 %v344
        %365 = vmatprep.subr.bf16.mxu0 0
        %366 = vmatpush1.bf16.msra.mxu0 %v345
        %367 = vmatprep.subr.bf16.mxu0 0
        %368 = vmatpush1.bf16.msra.mxu0 %v346
        %369 = vmatprep.subr.bf16.mxu0 0
        %370 = vmatpush1.bf16.msra.mxu0 %v347
        %371 = vmatprep.subr.bf16.mxu0 0
        %372 = vmatpush1.bf16.msra.mxu0 %v348
        %373 = vmatprep.subr.bf16.mxu0 0
        %374 = vmatpush1.bf16.msra.mxu0 0
        %375 = vmatprep.subr.bf16.mxu0 0
        %376 = vmatpush1.bf16.msra.mxu0 0
        %377 = vmatprep.subr.bf16.mxu0 0
        %378 = vmatpush1.bf16.msra.mxu0 0
        %379 = vmatprep.subr.bf16.mxu0 0
        %380 = vmatpush1.bf16.msra.mxu0 0
        %381 = vmatprep.subr.bf16.mxu0 0
        %382 = vmatpush1.bf16.msra.mxu0 0
        %383 = vmatprep.subr.bf16.mxu0 0
        %384 = vmatpush1.bf16.msra.mxu0 0
        %385 = vmatprep.subr.bf16.mxu0 0
        %386 = vmatpush1.bf16.msra.mxu0 0
        %387 = vmatprep.subr.bf16.mxu0 0
        %388 = vmatpush1.bf16.msra.mxu0 0
        %389 = vmatprep.mubr.bf16.mxu0 0
        %390 = vmatmul.mubr.bf16.gmra.mrb[0].mxu0 %v307
        %v391 = vpop.f32.mrb[0].mxu0
        %v392 = vadd.f32 %v301, %v391
        %v393 = vpop.f32.mrb[0].mxu0
        %v394 = vpop.f32.mrb[0].mxu0
        %v395 = vadd.f32 %v301, %v394
        %v396 = vpop.f32.mrb[0].mxu0
        %397 = vdwg.mxu0
        %v398 = vld [vmem:[%s3] sm:$0xff]
        %v399 = vld [vmem:[%s3 + $0x8] sm:$0xff]
        %v400 = vld [vmem:[%s3 + $0x10] sm:$0xff]
        %v401 = vld [vmem:[%s3 + $0x18] sm:$0xff]
        %v402 = vld [vmem:[%s3 + $0x20] sm:$0xff]
        %v403 = vld [vmem:[%s3 + $0x28] sm:$0xff]
        %v404 = vld [vmem:[%s3 + $0x30] sm:$0xff]
        %v405 = vld [vmem:[%s3 + $0x38] sm:$0xff]
        %v406 = vld [vmem:[%s3 + $0x40] sm:$0xff]
        %v407 = vld [vmem:[%s3 + $0x48] sm:$0xff]
        %v408 = vld [vmem:[%s3 + $0x50] sm:$0xff]
        %v409 = vld [vmem:[%s3 + $0x58] sm:$0xff]
        %v410 = vld [vmem:[%s3 + $0x60] sm:$0xff]
        %v411 = vld [vmem:[%s3 + $0x68] sm:$0xff]
        %v412 = vld [vmem:[%s3 + $0x70] sm:$0xff]
        %v413 = vld [vmem:[%s3 + $0x78] sm:$0xff]
        %414 = vmatprep.subr.mxu0 0.0
        %415 = vmatpush1.msra.mxu0 %v398
        %416 = vmatprep.subr.mxu0 0.0
        %417 = vmatpush1.msra.mxu0 %v399
        %418 = vmatprep.subr.mxu0 0.0
        %419 = vmatpush1.msra.mxu0 %v400
        %420 = vmatprep.subr.mxu0 0.0
        %421 = vmatpush1.msra.mxu0 %v401
        %422 = vmatprep.subr.mxu0 0.0
        %423 = vmatpush1.msra.mxu0 %v402
        %424 = vmatprep.subr.mxu0 0.0
        %425 = vmatpush1.msra.mxu0 %v403
        %426 = vmatprep.subr.mxu0 0.0
        %427 = vmatpush1.msra.mxu0 %v404
        %428 = vmatprep.subr.mxu0 0.0
        %429 = vmatpush1.msra.mxu0 %v405
        %430 = vmatprep.subr.mxu0 0.0
        %431 = vmatpush1.msra.mxu0 %v406
        %432 = vmatprep.subr.mxu0 0.0
        %433 = vmatpush1.msra.mxu0 %v407
        %434 = vmatprep.subr.mxu0 0.0
        %435 = vmatpush1.msra.mxu0 %v408
        %436 = vmatprep.subr.mxu0 0.0
        %437 = vmatpush1.msra.mxu0 %v409
        %438 = vmatprep.subr.mxu0 0.0
        %439 = vmatpush1.msra.mxu0 %v410
        %440 = vmatprep.subr.mxu0 0.0
        %441 = vmatpush1.msra.mxu0 %v411
        %442 = vmatprep.subr.mxu0 0.0
        %443 = vmatpush1.msra.mxu0 %v412
        %444 = vmatprep.subr.mxu0 0.0
        %445 = vmatpush1.msra.mxu0 %v413
        %446 = vmatprep.subr.mxu0 0.0
        %447 = vmatpush1.msra.mxu0 0.0
        %448 = vmatprep.subr.mxu0 0.0
        %449 = vmatpush1.msra.mxu0 0.0
        %450 = vmatprep.subr.mxu0 0.0
        %451 = vmatpush1.msra.mxu0 0.0
        %452 = vmatprep.subr.mxu0 0.0
        %453 = vmatpush1.msra.mxu0 0.0
        %454 = vmatprep.subr.mxu0 0.0
        %455 = vmatpush1.msra.mxu0 0.0
        %456 = vmatprep.subr.mxu0 0.0
        %457 = vmatpush1.msra.mxu0 0.0
        %458 = vmatprep.subr.mxu0 0.0
        %459 = vmatpush1.msra.mxu0 0.0
        %460 = vmatprep.subr.mxu0 0.0
        %461 = vmatpush1.msra.mxu0 0.0
        %462 = vmatprep.subr.mxu0 0.0
        %463 = vmatpush1.msra.mxu0 0.0
        %464 = vmatprep.subr.mxu0 0.0
        %465 = vmatpush1.msra.mxu0 0.0
        %466 = vmatprep.subr.mxu0 0.0
        %467 = vmatpush1.msra.mxu0 0.0
        %468 = vmatprep.subr.mxu0 0.0
        %469 = vmatpush1.msra.mxu0 0.0
        %470 = vmatprep.subr.mxu0 0.0
        %471 = vmatpush1.msra.mxu0 0.0
        %472 = vmatprep.subr.mxu0 0.0
        %473 = vmatpush1.msra.mxu0 0.0
        %474 = vmatprep.subr.mxu0 0.0
        %475 = vmatpush1.msra.mxu0 0.0
        %476 = vmatprep.subr.mxu0 0.0
        %477 = vmatpush1.msra.mxu0 0.0
        %478 = vmatprep.mubr.f32.mxu0 0.0
        %479 = vmatmul.mubr.f32.gmra.mrb[0].mxu0 %v392
        %v480 = vpop.f32.mrb[0].mxu0
        %v481 = vadd.f32 0.0, %v480
        %v482 = vpop.f32.mrb[0].mxu0
        %483 = vmatprep.mubr.f32.mxu0 0.0
        %484 = vmatmul.mubr.f32.gmra.mrb[0].mxu0 %v395
        %v485 = vpop.f32.mrb[0].mxu0
        %v486 = vadd.f32 0.0, %v485
        %v487 = vpop.f32.mrb[0].mxu0
        %488 = vdwg.mxu0
        %v489 = vmul.f32 %v481, 0.17677669
        %v490 = vmul.f32 %v486, 0.17677669
        %vm491 = vcmask 7168
        %v492 = vsel %vm491, %v489, -inf
        %v493 = vsel %vm491, %v490, -inf
        %v494 = vmax.f32 %v492, %v493
        %v495 = vrot.slane %v494, 4
        %v496 = vmax.f32 %v494, %v495
        %v497 = vrot.slane %v496, 2
        %v498 = vmax.f32 %v496, %v497
        %v499 = vrot.slane %v498, 1
        %v500 = vmax.f32 %v498, %v499
        %v501 = vsub.f32 %v489, %v500
        %v502 = vsub.f32 %v490, %v500
        %v503 = vmul.f32 %v501, 1.442695
        %v504 = vpow.pop %v503
        %v505 = vmul.f32 %v502, 1.442695
        %v506 = vpow.pop %v505
        %v507 = vsel %vm491, %v504, 0.0
        %v508 = vsel %vm491, %v506, 0.0
        %v509 = vadd.f32 %v507, %v508
        %v510 = vrot.slane %v509, 4
        %v511 = vadd.f32 %v509, %v510
        %v512 = vrot.slane %v511, 2
        %v513 = vadd.f32 %v511, %v512
        %v514 = vrot.slane %v513, 1
        %v515 = vadd.f32 %v513, %v514
        %v516 = vrcp.pop %v515
        %v517 = vmul.f32 %v504, %v516
        %v518 = vmul.f32 %v506, %v516
        %520 = vset.pattern.permute.xlu0 0
        %521 = vperm.xlu0 %520, %v517
        %v522 = vpop.permute.xlu0 %521
        %525 = vset.pattern.permute.xlu0 0
        %526 = vperm.xlu0 %525, %v518
        %v527 = vpop.permute.xlu0 %526
        %v529 = vmul.f32 %v522, %v392
        %v530 = vmul.f32 %v527, %v395
        %v531 = vadd.f32 %v529, %v530
        %v532 = vrot.slane %v531, 4
        %v533 = vadd.f32 %v531, %v532
        %v534 = vrot.slane %v533, 2
        %v535 = vadd.f32 %v533, %v534
        %v536 = vrot.slane %v535, 1
        %v537 = vadd.f32 %v535, %v536
        %s538 = scvt.s32.f32 %s26
        %v539 = vld [vmem:[%s4] sm:$0x1]
        %s540 = ssub.f32 1.0, %s538
        %v541 = vstv %s540
        %v542 = vmul.f32 %v539, %v541
        %v543 = vld [vmem:[%s4 + $0x1] sm:$0x1]
        %v544 = vstv %s538
        %v545 = vmul.f32 %v543, %v544
        %v546 = vadd.f32 %v542, %v545
        %v547 = vmul.f32 %v537, %v546
        %vm548 = vcmask 1040384
        %v549 = vsel %vm548, %v547, 0.0
        %550 = vadd.xlane.f32.xlu0 %v549
        %v551 = vpop.xlane.xlu0 %550
        %p552 = scmp.eq.s32.totalorder %s26, 0
        // Predicated region
        $region45: #{tpu_custom_call.1} parent=43 // pred_check
          %p553 = pneg %p552
        $region46: #{tpu_custom_call.1} parent=43 // pred_check_branch
          %555 = sbr.rel (%p553) target = $region48
        $region47: #{tpu_custom_call.1} parent=43 // pred_region
          %s556 = sld [smem:[#allocation2]]
          %v557 = vstv %s556
          %558 = vst [vmem:[%s267] sm:$0xff] %v557
        $region48: #{tpu_custom_call.1} parent=43 // pred_fallthru
          _
        %v559 = vld [vmem:[%s267] sm:$0xff]
        %v560 = vlaneseq
        %v561 = vshrl.u32 %v560, 7
        %v562 = vsub.s32 0, %v561
        %v563 = vrot.slane %v551, %v562
        %v564 = vadd.f32 %v559, %v563
        %565 = vst [vmem:[%s267] sm:$0xff] %v564
        %s566 = sand.u32 %s174, 1
        %s567 = scalar_lea.sflag [#allocation4], %s566
        %s568 = sand.u32 %s174, 1
        %s569 = smul.addr %s568, 8
        %s570 = scalar_lea.vmem [#allocation3], %s569
        // Predicated region
        $region49: #{tpu_custom_call.1} parent=43 // pred_check
          %p571 = pneg %p184
        $region50: #{tpu_custom_call.1} parent=43 // pred_check_branch
          %573 = sbr.rel (%p571) target = $region52
        $region51: #{tpu_custom_call.1} parent=43 // pred_region
          %s575 = ssub.s32 128, 128
          %576 = vsyncadd %s567, %s575
          %s577 = smul.addr %s25, 128
          %s578 = scalar_lea.hbm %s6, %s577
          %s580 = sshll.u32 %s570, 4
          %s581 = int_to_ptr.vmem [resolvable:$true] %s580
          %583 = dma.vmem_to_hbm [thread:$0]  %s581, 128, %s578, %s567
        $region52: #{tpu_custom_call.1} parent=43 // pred_fallthru
          _
      $region44: #{tpu_custom_call.1} parent=5 // pred_fallthru
        _
      %p584 = scmp.le.s32.totalorder 2, %s16
      // Predicated region
      $region53: #{tpu_custom_call.1} parent=5 // pred_check
        %p585 = pneg %p584
      $region54: #{tpu_custom_call.1} parent=5 // pred_check_branch
        %587 = sbr.rel (%p585) target = $region56
      $region55: #{tpu_custom_call.1} parent=5 // pred_region
        %s588 = ssub.s32 %s16, 2
        // Predicated region
        $region57: #{tpu_custom_call.1} parent=55 // pred_check
          %p589 = pneg %p190
        $region58: #{tpu_custom_call.1} parent=55 // pred_check_branch
          %591 = sbr.rel (%p589) target = $region60
        $region59: #{tpu_custom_call.1} parent=55 // pred_region
          %s592 = sand.u32 %s175, 1
          %s593 = scalar_lea.sflag [#allocation4], %s592
          %s594 = sand.u32 %s175, 1
          %s595 = smul.addr %s594, 8
          %s596 = scalar_lea.vmem [#allocation3], %s595
          %597 = dma.done %s593, 128
        $region60: #{tpu_custom_call.1} parent=55 // pred_fallthru
          _
      $region56: #{tpu_custom_call.1} parent=5 // pred_fallthru
        _
    $region6: #{tpu_custom_call.1} parent=1 // loop_footer
      %s20 = sadd.s32 1, %s16
    $region7: #{tpu_custom_call.1} parent=1 // loop_footer_branch
      %15 = sbr.rel target = $region3
    $region8: #{tpu_custom_call.1} parent=1 // loop_exit
      _
    %598 = vsyncpa [#allocation4], 1
    %s599 = scalar_lea.sflag [#allocation4], 1
    %600 = vsyncpa %s599, 1

</llo_original>
